<compile_context>
chip_gen: v6e
topology: v6e:2x2x1
jax: 0.10.0
libtpu: 0.0.40
codegen_flags: <defaults>
</compile_context>

<pallas_src>
import functools

import jax
import jax.numpy as jnp
from jax import lax
from jax.experimental import pallas as pl
from jax.experimental.pallas import tpu as pltpu


def _rnn_kernel(inp_ref, h0_ref, w_hh_t_ref, g_ref):
    """Time recurrence for one batch tile, fully inside one grid step.

    inp_ref : (T, bt, Ng)  precomputed v_t @ W_ih^T, time-major
    h0_ref  : (bt, Ng)     initial hidden state p0 @ W_enc^T
    w_hh_t  : (Ng, Ng)     recurrent weight (transposed), VMEM-resident
    g_ref   : (T, bt, Ng)  all hidden states (output)
    """
    T = inp_ref.shape[0]

    def step(t, h):
        h_new = jnp.maximum(
            inp_ref[t]
            + jnp.dot(h, w_hh_t_ref[...], preferred_element_type=jnp.float32),
            0.0)
        g_ref[t] = h_new.astype(g_ref.dtype)
        return h_new

    lax.fori_loop(0, T, step, h0_ref[...])


def _decode_kernel(g_ref, w_dec_t_ref, out_ref, *, log_softmax):
    """Batched decoder: (tile_m, Ng) @ (Ng, Np) + optional log_softmax."""
    logits = jnp.dot(g_ref[...], w_dec_t_ref[...],
                     preferred_element_type=jnp.float32)
    if log_softmax:
        m = jnp.max(logits, axis=-1, keepdims=True)
        z = logits - m
        lse = jnp.log(jnp.sum(jnp.exp(z), axis=-1, keepdims=True))
        logits = z - lse
    out_ref[...] = logits.astype(out_ref.dtype)


def _pick_tile(total, candidates):
    for c in candidates:
        if total % c == 0:
            return c
    return total  # full extent (always legal as a block dim)


def sorscher_forward(v, p0, params, log_softmax=False):
    """v: (B, T, 2), p0: (B, Np) -> (B, T, Np), matching the PyTorch forward."""
    B, T, _ = v.shape
    Np = params["w_dec"].shape[0]
    Ng = params["w_hh"].shape[0]
    f32 = jnp.float32

    w_enc_t = params["w_enc"].T.astype(f32)   # (Np, Ng)
    w_ih_t = params["w_ih"].T.astype(f32)     # (2, Ng)
    w_hh_t = params["w_hh"].T.astype(f32)     # (Ng, Ng)
    w_dec_t = params["w_dec"].T.astype(f32)   # (Ng, Np)

    # ---- hoisted non-recurrent work (plain XLA) -----------------------------
    h0 = p0.astype(f32) @ w_enc_t                          # (B, Ng)
    v_tm = jnp.transpose(v, (1, 0, 2)).astype(f32)         # (T, B, 2)
    inp = jnp.einsum("tbc,cg->tbg", v_tm, w_ih_t)          # (T, B, Ng)

    # ---- kernel 1: recurrence over time, grid over independent batch tiles --
    bt = _pick_tile(B, (128, 64, 32, 16, 8))

    g_tm = pl.pallas_call(
        _rnn_kernel,
        out_shape=jax.ShapeDtypeStruct((T, B, Ng), f32),
        grid_spec=pltpu.PrefetchScalarGridSpec(
            num_scalar_prefetch=0,
            grid=(B // bt,),
            in_specs=[
                pl.BlockSpec((T, bt, Ng), lambda b: (0, b, 0)),        # inp tile
                pl.BlockSpec((bt, Ng), lambda b: (b, 0)),              # h0 tile
                pl.BlockSpec(memory_space=pltpu.MemorySpace.VMEM),     # W_hh^T (resident, single-buffered)
            ],
            out_specs=pl.BlockSpec((T, bt, Ng), lambda b: (0, b, 0)),
        ),
        compiler_params=pltpu.CompilerParams(
            dimension_semantics=("parallel",),          # batch tiles are independent
            vmem_limit_bytes=64 * 1024 * 1024),
    )(inp, h0, w_hh_t)

    # ---- kernel 2: batched decode + log_softmax (MXU-efficient, lane-dense) --
    M = T * B
    g2d = g_tm.reshape(M, Ng)
    tm = _pick_tile(M, (512, 256, 128, 64, 32, 16, 8))

    out2d = pl.pallas_call(
        functools.partial(_decode_kernel, log_softmax=log_softmax),
        out_shape=jax.ShapeDtypeStruct((M, Np), f32),
        grid_spec=pltpu.PrefetchScalarGridSpec(
            num_scalar_prefetch=0,
            grid=(M // tm,),
            in_specs=[
                pl.BlockSpec((tm, Ng), lambda i: (i, 0)),              # g rows
                pl.BlockSpec(memory_space=pltpu.MemorySpace.VMEM),     # W_dec^T (resident)
            ],
            out_specs=pl.BlockSpec((tm, Np), lambda i: (i, 0)),
        ),
        compiler_params=pltpu.CompilerParams(
            dimension_semantics=("parallel",),
            vmem_limit_bytes=64 * 1024 * 1024),
    )(g2d, w_dec_t)

    return jnp.transpose(out2d.reshape(T, B, Np), (1, 0, 2))  # (B, T, Np)


def _xavier_uniform(key, shape):
    fan_out, fan_in = shape
    bound = jnp.sqrt(6.0 / (fan_in + fan_out))
    return jax.random.uniform(key, shape, jnp.float32, -bound, bound)


def init_params(key, Ng, Np):
    k1, k2, k3, k4 = jax.random.split(key, 4)
    return {
        "w_enc": _xavier_uniform(k1, (Ng, Np)),   # init_position_encoder.weight
        "w_ih": _xavier_uniform(k2, (Ng, 2)),     # RNN.weight_ih_l0
        "w_hh": _xavier_uniform(k3, (Ng, Ng)),    # RNN.weight_hh_l0
        "w_dec": _xavier_uniform(k4, (Np, Ng)),   # decoder.weight
    }


def ref_forward(v, p0, params, log_softmax=False):
    """Pure-JAX reference (mirrors the PyTorch module)."""
    h = p0 @ params["w_enc"].T
    outs = []
    for t in range(v.shape[1]):
        h = jax.nn.relu(v[:, t] @ params["w_ih"].T + h @ params["w_hh"].T)
        outs.append(h)
    g = jnp.stack(outs, axis=1)
    preds = g @ params["w_dec"].T
    if log_softmax:
        preds = jax.nn.log_softmax(preds, axis=-1)
    return preds


if __name__ == "__main__":
    # Small shapes consistent with the module (Ng hidden, Np place cells).
    B, T, Ng, Np = 8, 8, 256, 128

    key = jax.random.PRNGKey(0)
    kp, kv, k0 = jax.random.split(key, 3)
    params = init_params(kp, Ng, Np)
    v = jax.random.normal(kv, (B, T, 2), jnp.float32)     # Cartesian velocities
    p0 = jax.random.normal(k0, (B, Np), jnp.float32)      # initial place-cell code

    out = sorscher_forward(v, p0, params, log_softmax=True)
    out = jax.block_until_ready(out)

    ref = ref_forward(v, p0, params, log_softmax=True)
    assert out.shape == (B, T, Np)
    assert jnp.allclose(out, ref, atol=1e-4, rtol=1e-4), "mismatch vs reference"

    print("KERNEL_OK")
</pallas_src>

<mosaic_0001>
module attributes {stable_mosaic.version = 11 : i64} {
  func.func @_rnn_kernel(%arg0: i32, %arg1: memref<8x8x256xf32, #tpu.memory_space<vmem>>, %arg2: memref<8x256xf32, #tpu.memory_space<vmem>>, %arg3: memref<256x256xf32, #tpu.memory_space<vmem>>, %arg4: memref<8x8x256xf32, #tpu.memory_space<vmem>>) attributes {dimension_semantics = [#tpu.dimension_semantics<parallel>], iteration_bounds = array<i64: 1>, scalar_prefetch = 0 : i64, scratch_operands = 0 : i64, tpu.core_type = #tpu.core_type<tc>, window_params = [{transform_indices = @transform_0, window_bounds = array<i64: 8, 8, 256>}, {transform_indices = @transform_1, window_bounds = array<i64: 8, 256>}, {pipeline_mode = #tpu.pipeline_mode<synchronous>, transform_indices = @transform_2, window_bounds = array<i64: 256, 256>}, {transform_indices = @transform_3, window_bounds = array<i64: 8, 8, 256>}]} {
    %c0 = arith.constant 0 : index
    %c0_0 = arith.constant 0 : index
    %0 = vector.load %arg2[%c0, %c0_0] : memref<8x256xf32, #tpu.memory_space<vmem>>, vector<8x256xf32>
    %c0_i32 = arith.constant 0 : i32
    %c8_i32 = arith.constant 8 : i32
    %1 = arith.addi %c0_i32, %c8_i32 : i32
    %c1_i32 = arith.constant 1 : i32
    %2 = scf.for %arg5 = %c0_i32 to %1 step %c1_i32 iter_args(%arg6 = %0) -> (vector<8x256xf32>)  : i32 {
      %3 = arith.index_cast %arg5 : i32 to index
      %c0_2 = arith.constant 0 : index
      %c0_3 = arith.constant 0 : index
      %4 = vector.load %arg1[%3, %c0_2, %c0_3] : memref<8x8x256xf32, #tpu.memory_space<vmem>>, vector<1x8x256xf32>
      %5 = vector.shape_cast %4 : vector<1x8x256xf32> to vector<8x256xf32>
      %c0_4 = arith.constant 0 : index
      %c0_5 = arith.constant 0 : index
      %6 = vector.load %arg3[%c0_4, %c0_5] : memref<256x256xf32, #tpu.memory_space<vmem>>, vector<256x256xf32>
      %cst = arith.constant dense<0.000000e+00> : vector<8x256xf32>
      %7 = tpu.matmul %arg6, %6, %cst {dimension_numbers = #tpu.dot_dimension_numbers<[1], [0], [0], [1], [0, 0, 1, 1], [], []>} : vector<8x256xf32>, vector<256x256xf32>, vector<8x256xf32> -> vector<8x256xf32>
      %8 = arith.addf %5, %7 : vector<8x256xf32>
      %cst_6 = arith.constant 0.000000e+00 : f32
      %9 = vector.broadcast %cst_6 : f32 to vector<8x256xf32>
      %10 = arith.maximumf %8, %9 : vector<8x256xf32>
      %11 = arith.index_cast %arg5 : i32 to index
      %c0_7 = arith.constant 0 : index
      %c0_8 = arith.constant 0 : index
      %12 = vector.load %arg4[%11, %c0_7, %c0_8] : memref<8x8x256xf32, #tpu.memory_space<vmem>>, vector<1x8x256xf32>
      %13 = vector.shape_cast %12 : vector<1x8x256xf32> to vector<8x256xf32>
      %14 = vector.shape_cast %10 : vector<8x256xf32> to vector<1x8x256xf32>
      tpu.vector_store %arg4[%11, %c0_7, %c0_8], %14 {strides = array<i32>} : memref<8x8x256xf32, #tpu.memory_space<vmem>>, vector<1x8x256xf32>,
      scf.yield %10 : vector<8x256xf32>
    }
    %c8_i32_1 = arith.constant 8 : i32
    return
  }
  func.func @transform_0(%arg0: i32) -> (i32, i32, i32) {
    %c0_i32 = arith.constant 0 : i32
    %c0_i32_0 = arith.constant 0 : i32
    %c0_i32_1 = arith.constant 0 : i32
    return %c0_i32, %arg0, %c0_i32_0 : i32, i32, i32
  }
  func.func @transform_1(%arg0: i32) -> (i32, i32) {
    %c0_i32 = arith.constant 0 : i32
    %c0_i32_0 = arith.constant 0 : i32
    return %arg0, %c0_i32 : i32, i32
  }
  func.func @transform_2(%arg0: i32) -> (i32, i32) {
    %c0_i32 = arith.constant 0 : i32
    %c0_i32_0 = arith.constant 0 : i32
    %c0_i32_1 = arith.constant 0 : i32
    return %c0_i32, %c0_i32_0 : i32, i32
  }
  func.func @transform_3(%arg0: i32) -> (i32, i32, i32) {
    %c0_i32 = arith.constant 0 : i32
    %c0_i32_0 = arith.constant 0 : i32
    %c0_i32_1 = arith.constant 0 : i32
    return %c0_i32, %arg0, %c0_i32_0 : i32, i32, i32
  }
}

</mosaic_0001>

<llo_original>
// kernel: tpu_custom_call.1
$region0: #{tpu_custom_call.1}
  #allocation0 [shape = 'u32[]', space=smem, size = 0x4, offset = 0x4, fixed_abs, tag = 'smem constant byte address 0x4 - core index']
  #allocation1 [shape = 'u32[144,128]{1,0:T(1,128)}', space=vmem, size = 0x12000, scoped, tag = 'internal scratch']
  %s0 = inlined_call_operand.hbm [shape: f32[8,8,256], index: 0, kind: input, shape index: {}]
  %s1 = inlined_call_operand.hbm [shape: f32[8,256], index: 1, kind: input, shape index: {}]
  %s2 = inlined_call_operand.hbm [shape: f32[256,256], index: 2, kind: input, shape index: {}]
  %s3 = inlined_call_operand.hbm [shape: f32[8,8,256], index: 3, kind: output, shape index: {}]
  %s4 = sld [smem:[#allocation0]]
  $region41: #{tpu_custom_call.1} parent=0
    _
  %s6 = ssub.s32 1, %s4
  %s7 = scalar_select 0, %s6, %s4
  $region1: #{tpu_custom_call.1} parent=0
    #allocation2 [shape = 'u8[65536]{0}', space=vmem, size = 0x10000, scoped, tag = 'input window, operand 0, single buffered']
    #allocation3 [shape = 's32[1]{0}', space=sflag, size = 0x4, scoped, tag = 'scoped memory for tpu_custom_call.1']
    #allocation4 [shape = 's32[1]{0}', space=sflag, size = 0x4, scoped, tag = 'scoped memory for tpu_custom_call.1']
    #allocation5 [shape = 'u8[8192]{0}', space=vmem, size = 0x2000, scoped, tag = 'input window, operand 1, single buffered']
    #allocation6 [shape = 's32[1]{0}', space=sflag, size = 0x4, scoped, tag = 'scoped memory for tpu_custom_call.1']
    #allocation7 [shape = 'u8[262144]{0}', space=vmem, size = 0x40000, scoped, tag = 'input window, operand 2, single buffered']
    #allocation8 [shape = 'u8[65536]{0}', space=vmem, size = 0x10000, scoped, tag = 'output window, operand 0, single buffered']
    %8 = vsyncpa [#allocation3], 0
    %9 = vsyncpa [#allocation6], 0
    %10 = vsyncpa [#allocation4], 0
    // Predicated region
    $region2: #{tpu_custom_call.1} parent=1 // pred_check
      _
    $region3: #{tpu_custom_call.1} parent=1 // pred_check_branch
      %12 = sbr.rel (0) target = $region5
    $region4: #{tpu_custom_call.1} parent=1 // pred_region
      %s14 = ssub.s32 2048, 2048
      %15 = vsyncadd [#allocation3], %s14
      %s16 = sshll.u32 [#allocation2], 4
      %s17 = int_to_ptr.vmem [resolvable:$true] %s16
      %22 = dma.hbm_to_vmem [thread:$0]  %s0, 2048, %s17, [#allocation3], 256, 256, 16
    $region5: #{tpu_custom_call.1} parent=1 // pred_fallthru
      _
    // Predicated region
    $region6: #{tpu_custom_call.1} parent=1 // pred_check
      _
    $region7: #{tpu_custom_call.1} parent=1 // pred_check_branch
      %24 = sbr.rel (0) target = $region9
    $region8: #{tpu_custom_call.1} parent=1 // pred_region
      %s26 = ssub.s32 256, 256
      %27 = vsyncadd [#allocation6], %s26
      %s29 = sshll.u32 [#allocation5], 4
      %s30 = int_to_ptr.vmem [resolvable:$true] %s29
      %32 = dma.hbm_to_vmem [thread:$0]  %s1, 256, %s30, [#allocation6]
    $region9: #{tpu_custom_call.1} parent=1 // pred_fallthru
      _
    // Predicated region
    $region10: #{tpu_custom_call.1} parent=1 // pred_check
      _
    $region11: #{tpu_custom_call.1} parent=1 // pred_check_branch
      %34 = sbr.rel (0) target = $region13
    $region12: #{tpu_custom_call.1} parent=1 // pred_region
      %s36 = ssub.s32 8192, 8192
      %37 = vsyncadd [#allocation6], %s36
      %s38 = sshll.u32 [#allocation7], 4
      %s39 = int_to_ptr.vmem [resolvable:$true] %s38
      %44 = dma.hbm_to_vmem [thread:$0]  %s2, 8192, %s39, [#allocation6], 256, 256, 16
    $region13: #{tpu_custom_call.1} parent=1 // pred_fallthru
      _
    // Predicated region
    $region14: #{tpu_custom_call.1} parent=1 // pred_check
      _
    $region15: #{tpu_custom_call.1} parent=1 // pred_check_branch
      %46 = sbr.rel (0) target = $region17
    $region16: #{tpu_custom_call.1} parent=1 // pred_region
      %47 = dma.done [#allocation3], 2048
    $region17: #{tpu_custom_call.1} parent=1 // pred_fallthru
      _
    // Predicated region
    $region18: #{tpu_custom_call.1} parent=1 // pred_check
      _
    $region19: #{tpu_custom_call.1} parent=1 // pred_check_branch
      %49 = sbr.rel (0) target = $region21
    $region20: #{tpu_custom_call.1} parent=1 // pred_region
      %50 = dma.done [#allocation6], 256
    $region21: #{tpu_custom_call.1} parent=1 // pred_fallthru
      _
    // Predicated region
    $region22: #{tpu_custom_call.1} parent=1 // pred_check
      _
    $region23: #{tpu_custom_call.1} parent=1 // pred_check_branch
      %52 = sbr.rel (0) target = $region25
    $region24: #{tpu_custom_call.1} parent=1 // pred_region
      %53 = dma.done [#allocation6], 8192
    $region25: #{tpu_custom_call.1} parent=1 // pred_fallthru
      _
    %v54 = vld [vmem:[#allocation5] sm:$0xff]
    %v55 = vld [vmem:[#allocation5 + $0x8] sm:$0xff]
    loop: start=0, step=1, limit=8
    $region26: #{tpu_custom_call.1} parent=1 // loop_pre_header
      _
    $region27: #{tpu_custom_call.1} parent=1 // loop_header
      %s57 = sphi 0, %s61
      %p58 = scmp.ge.s32.totalorder %s57, 8
      %v62 = vphi %v54, %v206
      %v63 = vphi %v55, %v207
    $region28: #{tpu_custom_call.1} parent=1 // loop_header_branch
      %60 = sbr.rel (%p58) target = $region32
    $region29: #{tpu_custom_call.1} parent=1 // loop_body
      %s64 = smul.u32 %s57, 2
      %s65 = smul.addr %s64, 8
      %s66 = scalar_lea.vmem [#allocation2], %s65
      %v67 = vld [vmem:[%s66] sm:$0xff]
      %v68 = vld [vmem:[%s66 + $0x8] sm:$0xff]
      %v69 = vld [vmem:[#allocation7] sm:$0xff]
      %v70 = vld [vmem:[#allocation7 + $0x8] sm:$0xff]
      %v71 = vld [vmem:[#allocation7 + $0x10] sm:$0xff]
      %v72 = vld [vmem:[#allocation7 + $0x18] sm:$0xff]
      %v73 = vld [vmem:[#allocation7 + $0x20] sm:$0xff]
      %v74 = vld [vmem:[#allocation7 + $0x28] sm:$0xff]
      %v75 = vld [vmem:[#allocation7 + $0x30] sm:$0xff]
      %v76 = vld [vmem:[#allocation7 + $0x38] sm:$0xff]
      %v77 = vld [vmem:[#allocation7 + $0x40] sm:$0xff]
      %v78 = vld [vmem:[#allocation7 + $0x48] sm:$0xff]
      %v79 = vld [vmem:[#allocation7 + $0x50] sm:$0xff]
      %v80 = vld [vmem:[#allocation7 + $0x58] sm:$0xff]
      %v81 = vld [vmem:[#allocation7 + $0x60] sm:$0xff]
      %v82 = vld [vmem:[#allocation7 + $0x68] sm:$0xff]
      %v83 = vld [vmem:[#allocation7 + $0x70] sm:$0xff]
      %v84 = vld [vmem:[#allocation7 + $0x78] sm:$0xff]
      %v85 = vld [vmem:[#allocation7 + $0x80] sm:$0xff]
      %v86 = vld [vmem:[#allocation7 + $0x88] sm:$0xff]
      %v87 = vld [vmem:[#allocation7 + $0x90] sm:$0xff]
      %v88 = vld [vmem:[#allocation7 + $0x98] sm:$0xff]
      %v89 = vld [vmem:[#allocation7 + $0xa0] sm:$0xff]
      %v90 = vld [vmem:[#allocation7 + $0xa8] sm:$0xff]
      %v91 = vld [vmem:[#allocation7 + $0xb0] sm:$0xff]
      %v92 = vld [vmem:[#allocation7 + $0xb8] sm:$0xff]
      %v93 = vld [vmem:[#allocation7 + $0xc0] sm:$0xff]
      %v94 = vld [vmem:[#allocation7 + $0xc8] sm:$0xff]
      %v95 = vld [vmem:[#allocation7 + $0xd0] sm:$0xff]
      %v96 = vld [vmem:[#allocation7 + $0xd8] sm:$0xff]
      %v97 = vld [vmem:[#allocation7 + $0xe0] sm:$0xff]
      %v98 = vld [vmem:[#allocation7 + $0xe8] sm:$0xff]
      %v99 = vld [vmem:[#allocation7 + $0xf0] sm:$0xff]
      %v100 = vld [vmem:[#allocation7 + $0xf8] sm:$0xff]
      %v101 = vld [vmem:[#allocation7 + $0x100] sm:$0xff]
      %v102 = vld [vmem:[#allocation7 + $0x108] sm:$0xff]
      %v103 = vld [vmem:[#allocation7 + $0x110] sm:$0xff]
      %v104 = vld [vmem:[#allocation7 + $0x118] sm:$0xff]
      %v105 = vld [vmem:[#allocation7 + $0x120] sm:$0xff]
      %v106 = vld [vmem:[#allocation7 + $0x128] sm:$0xff]
      %v107 = vld [vmem:[#allocation7 + $0x130] sm:$0xff]
      %v108 = vld [vmem:[#allocation7 + $0x138] sm:$0xff]
      %v109 = vld [vmem:[#allocation7 + $0x140] sm:$0xff]
      %v110 = vld [vmem:[#allocation7 + $0x148] sm:$0xff]
      %v111 = vld [vmem:[#allocation7 + $0x150] sm:$0xff]
      %v112 = vld [vmem:[#allocation7 + $0x158] sm:$0xff]
      %v113 = vld [vmem:[#allocation7 + $0x160] sm:$0xff]
      %v114 = vld [vmem:[#allocation7 + $0x168] sm:$0xff]
      %v115 = vld [vmem:[#allocation7 + $0x170] sm:$0xff]
      %v116 = vld [vmem:[#allocation7 + $0x178] sm:$0xff]
      %v117 = vld [vmem:[#allocation7 + $0x180] sm:$0xff]
      %v118 = vld [vmem:[#allocation7 + $0x188] sm:$0xff]
      %v119 = vld [vmem:[#allocation7 + $0x190] sm:$0xff]
      %v120 = vld [vmem:[#allocation7 + $0x198] sm:$0xff]
      %v121 = vld [vmem:[#allocation7 + $0x1a0] sm:$0xff]
      %v122 = vld [vmem:[#allocation7 + $0x1a8] sm:$0xff]
      %v123 = vld [vmem:[#allocation7 + $0x1b0] sm:$0xff]
      %v124 = vld [vmem:[#allocation7 + $0x1b8] sm:$0xff]
      %v125 = vld [vmem:[#allocation7 + $0x1c0] sm:$0xff]
      %v126 = vld [vmem:[#allocation7 + $0x1c8] sm:$0xff]
      %v127 = vld [vmem:[#allocation7 + $0x1d0] sm:$0xff]
      %v128 = vld [vmem:[#allocation7 + $0x1d8] sm:$0xff]
      %v129 = vld [vmem:[#allocation7 + $0x1e0] sm:$0xff]
      %v130 = vld [vmem:[#allocation7 + $0x1e8] sm:$0xff]
      %v131 = vld [vmem:[#allocation7 + $0x1f0] sm:$0xff]
      %v132 = vld [vmem:[#allocation7 + $0x1f8] sm:$0xff]
      %133 = vmatprep.subr.mxu0 %v100
      %134 = vmatpush1.msra.mxu0 %v99
      %135 = vmatprep.subr.mxu0 %v98
      %136 = vmatpush1.msra.mxu0 %v97
      %137 = vmatprep.subr.mxu0 %v96
      %138 = vmatpush1.msra.mxu0 %v95
      %139 = vmatprep.subr.mxu0 %v94
      %140 = vmatpush1.msra.mxu0 %v93
      %141 = vmatprep.subr.mxu0 %v92
      %142 = vmatpush1.msra.mxu0 %v91
      %143 = vmatprep.subr.mxu0 %v90
      %144 = vmatpush1.msra.mxu0 %v89
      %145 = vmatprep.subr.mxu0 %v88
      %146 = vmatpush1.msra.mxu0 %v87
      %147 = vmatprep.subr.mxu0 %v86
      %148 = vmatpush1.msra.mxu0 %v85
      %149 = vmatprep.subr.mxu0 %v84
      %150 = vmatpush1.msra.mxu0 %v83
      %151 = vmatprep.subr.mxu0 %v82
      %152 = vmatpush1.msra.mxu0 %v81
      %153 = vmatprep.subr.mxu0 %v80
      %154 = vmatpush1.msra.mxu0 %v79
      %155 = vmatprep.subr.mxu0 %v78
      %156 = vmatpush1.msra.mxu0 %v77
      %157 = vmatprep.subr.mxu0 %v76
      %158 = vmatpush1.msra.mxu0 %v75
      %159 = vmatprep.subr.mxu0 %v74
      %160 = vmatpush1.msra.mxu0 %v73
      %161 = vmatprep.subr.mxu0 %v72
      %162 = vmatpush1.msra.mxu0 %v71
      %163 = vmatprep.subr.mxu0 %v70
      %164 = vmatpush1.msra.mxu0 %v69
      %165 = vmatprep.subr.mxu0 %v132
      %166 = vmatpush2.msra.mxu0 %v131
      %167 = vmatprep.subr.mxu0 %v130
      %168 = vmatpush2.msra.mxu0 %v129
      %169 = vmatprep.subr.mxu0 %v128
      %170 = vmatpush2.msra.mxu0 %v127
      %171 = vmatprep.subr.mxu0 %v126
      %172 = vmatpush2.msra.mxu0 %v125
      %173 = vmatprep.subr.mxu0 %v124
      %174 = vmatpush2.msra.mxu0 %v123
      %175 = vmatprep.subr.mxu0 %v122
      %176 = vmatpush2.msra.mxu0 %v121
      %177 = vmatprep.subr.mxu0 %v120
      %178 = vmatpush2.msra.mxu0 %v119
      %179 = vmatprep.subr.mxu0 %v118
      %180 = vmatpush2.msra.mxu0 %v117
      %181 = vmatprep.subr.mxu0 %v116
      %182 = vmatpush2.msra.mxu0 %v115
      %183 = vmatprep.subr.mxu0 %v114
      %184 = vmatpush2.msra.mxu0 %v113
      %185 = vmatprep.subr.mxu0 %v112
      %186 = vmatpush2.msra.mxu0 %v111
      %187 = vmatprep.subr.mxu0 %v110
      %188 = vmatpush2.msra.mxu0 %v109
      %189 = vmatprep.subr.mxu0 %v108
      %190 = vmatpush2.msra.mxu0 %v107
      %191 = vmatprep.subr.mxu0 %v106
      %192 = vmatpush2.msra.mxu0 %v105
      %193 = vmatprep.subr.mxu0 %v104
      %194 = vmatpush2.msra.mxu0 %v103
      %195 = vmatprep.subr.mxu0 %v102
      %196 = vmatpush2.msra.mxu0 %v101
      %197 = vmatprep.mubr.f32.mxu0 %v63
      %198 = vmatmul.mubr.f32.gmra.mxu0 %v62
      %v199 = vpop.f32.mrf.mxu0
      %v200 = vadd.f32 0.0, %v199
      %v201 = vpop.f32.mrf.mxu0
      %v202 = vadd.f32 0.0, %v201
      %203 = vdwg.mxu0
      %v204 = vadd.f32 %v67, %v200
      %v205 = vadd.f32 %v68, %v202
      %v206 = vmax.f32 %v204, 0.0
      %v207 = vmax.f32 %v205, 0.0
      %s208 = smul.addr %s64, 8
      %s209 = scalar_lea.vmem [#allocation8], %s208
      %210 = vst [vmem:[%s209] sm:$0xff] %v206
      %211 = vst [vmem:[%s209 + $0x8] sm:$0xff] %v207
    $region30: #{tpu_custom_call.1} parent=1 // loop_footer
      %s61 = sadd.s32 1, %s57
    $region31: #{tpu_custom_call.1} parent=1 // loop_footer_branch
      %56 = sbr.rel target = $region27
    $region32: #{tpu_custom_call.1} parent=1 // loop_exit
      _
    // Predicated region
    $region33: #{tpu_custom_call.1} parent=1 // pred_check
      _
    $region34: #{tpu_custom_call.1} parent=1 // pred_check_branch
      %213 = sbr.rel (0) target = $region36
    $region35: #{tpu_custom_call.1} parent=1 // pred_region
      %s215 = ssub.s32 2048, 2048
      %216 = vsyncadd [#allocation4], %s215
      %s217 = sshll.u32 [#allocation8], 4
      %s218 = int_to_ptr.vmem [resolvable:$true] %s217
      %223 = dma.vmem_to_hbm [thread:$0]  %s218, 2048, %s3, [#allocation4], 256, 256, 16
    $region36: #{tpu_custom_call.1} parent=1 // pred_fallthru
      _
    // Predicated region
    $region37: #{tpu_custom_call.1} parent=1 // pred_check
      _
    $region38: #{tpu_custom_call.1} parent=1 // pred_check_branch
      %225 = sbr.rel (0) target = $region40
    $region39: #{tpu_custom_call.1} parent=1 // pred_region
      %226 = dma.done [#allocation4], 2048
    $region40: #{tpu_custom_call.1} parent=1 // pred_fallthru
      _
    %227 = vsyncpa [#allocation3], 1
    %228 = vsyncpa [#allocation6], 1
    %229 = vsyncpa [#allocation4], 1

</llo_original>
